<compile_context>
chip_gen: v6e
topology: v6e:2x2x1
jax: 0.10.0
libtpu: 0.0.40
codegen_flags: <defaults>
</compile_context>

<pallas_src>
import functools

import jax
import jax.numpy as jnp
from jax.experimental import pallas as pl
from jax.experimental.pallas import tpu as pltpu


# ----------------------------------------------------------------------------
# Fused Pallas kernel: num_layers GNBlocks + MLP head in one invocation
# ----------------------------------------------------------------------------
def fused_selector_kernel(*refs, num_layers, use_norm):
    per_layer = 6 if use_norm else 4
    x_ref, a_ref, eagg_ref = refs[0], refs[1], refs[2]
    layer_refs = refs[3:3 + per_layer * num_layers]
    hw1_ref, hb1_ref, hw2_ref, hb2_ref = refs[3 + per_layer * num_layers:
                                              3 + per_layer * num_layers + 4]
    o_ref = refs[-1]

    a = a_ref[...]                                 # bf16 [N, N] in-adjacency counts
    eagg = eagg_ref[...].astype(jnp.bfloat16)      # bf16 [N, edge_dim]

    h = x_ref[...].astype(jnp.float32)             # f32  [N, cin]
    for layer in range(num_layers):
        lr = layer_refs[per_layer * layer: per_layer * (layer + 1)]
        ws_ref, wn_ref, we_ref, b_ref = lr[0], lr[1], lr[2], lr[3]

        h_b = h.astype(jnp.bfloat16)
        # neighbor aggregation, reassociated: (A @ h) @ W_neigh
        ax = jnp.dot(a, h_b, preferred_element_type=jnp.float32)

        z = jnp.dot(h_b, ws_ref[...], preferred_element_type=jnp.float32)
        z = z + jnp.dot(ax.astype(jnp.bfloat16), wn_ref[...],
                        preferred_element_type=jnp.float32)
        z = z + jnp.dot(eagg, we_ref[...], preferred_element_type=jnp.float32)
        z = z + b_ref[...]

        if use_norm:
            g_ref, bt_ref = lr[4], lr[5]
            # single-pass LayerNorm: one sweep over z feeds both reductions
            mean = jnp.mean(z, axis=-1, keepdims=True)
            var = jnp.mean(z * z, axis=-1, keepdims=True) - mean * mean
            z = (z - mean) * jax.lax.rsqrt(var + 1e-5)
            z = z * g_ref[...] + bt_ref[...]

        h = jnp.maximum(z, 0.0)

    # MLP head: Linear(H,H) -> ReLU -> Linear(H,1)
    h1 = jnp.dot(h.astype(jnp.bfloat16), hw1_ref[...],
                 preferred_element_type=jnp.float32) + hb1_ref[...]
    h1 = jnp.maximum(h1, 0.0)
    # H -> 1 projection on the VPU/XLU (broadcast-mul + lane reduction) instead
    # of a 1-column MXU matmul.
    o_ref[...] = (jnp.sum(h1 * hw2_ref[...], axis=-1, keepdims=True)
                  + hb2_ref[...])


def _vmem():
    # whole-array block resident in VMEM (shapes here are tiny)
    return pl.BlockSpec(memory_space=pltpu.MemorySpace.VMEM)


# ----------------------------------------------------------------------------
# Selector forward (graph glue in plain JAX, the whole hot path in one kernel)
# ----------------------------------------------------------------------------
def selector_forward(x, edge_index, edge_attr, params, *, use_norm=True):
    n = x.shape[0]
    src, dst = edge_index[0], edge_index[1]

    # dense in-adjacency: A[i, j] = #edges j -> i  (so A @ X sums in-neighbors;
    # duplicate edges are preserved as counts).  bf16 for the MXU.
    a = (jnp.zeros((n, n), jnp.float32).at[dst, src].add(1.0)
         .astype(jnp.bfloat16))
    # per-destination aggregated edge attributes via scatter-add: [N, edge_dim]
    eagg = jnp.zeros((n, edge_attr.shape[1]), jnp.float32).at[dst].add(edge_attr)

    convs = params["convs"]
    num_layers = len(convs)
    hidden = convs[0]["w_self"].shape[1]

    args = [x.astype(jnp.float32), a, eagg]
    for p in convs:
        args += [p["w_self"].astype(jnp.bfloat16),
                 p["w_neigh"].astype(jnp.bfloat16),
                 p["w_edge"].astype(jnp.bfloat16),
                 p["b"]]
        if use_norm:
            args += [p["gamma"], p["beta"]]
    head = params["head"]
    args += [head["w1"].astype(jnp.bfloat16),
             head["b1"],
             jnp.reshape(head["w2"], (1, hidden)),   # row vector for VPU reduce
             head["b2"]]

    kern = functools.partial(fused_selector_kernel,
                             num_layers=num_layers, use_norm=use_norm)
    return pl.pallas_call(
        kern,
        out_shape=jax.ShapeDtypeStruct((n, 1), jnp.float32),
        in_specs=[_vmem()] * len(args),
        out_specs=_vmem(),
    )(*args)


# ----------------------------------------------------------------------------
# Deterministic parameter construction (synthetic, no checkpoint)
# ----------------------------------------------------------------------------
def init_params(key, in_channels, hidden, edge_dim, num_layers):
    params = {"convs": []}
    for i in range(num_layers):
        cin = in_channels if i == 0 else hidden
        key, k1, k2, k3 = jax.random.split(key, 4)
        params["convs"].append({
            "w_self": jax.random.normal(k1, (cin, hidden), jnp.float32) * 0.1,
            "w_neigh": jax.random.normal(k2, (cin, hidden), jnp.float32) * 0.1,
            "w_edge": jax.random.normal(k3, (edge_dim, hidden), jnp.float32) * 0.1,
            "b": jnp.zeros((1, hidden), jnp.float32),
            "gamma": jnp.ones((1, hidden), jnp.float32),
            "beta": jnp.zeros((1, hidden), jnp.float32),
        })
    key, k1, k2 = jax.random.split(key, 3)
    params["head"] = {
        "w1": jax.random.normal(k1, (hidden, hidden), jnp.float32) * 0.1,
        "b1": jnp.zeros((1, hidden), jnp.float32),
        "w2": jax.random.normal(k2, (hidden, 1), jnp.float32) * 0.1,
        "b2": jnp.zeros((1, 1), jnp.float32),
    }
    return params


if __name__ == "__main__":
    # Small graph consistent with the module: N nodes, E directed edges.
    N, E = 8, 16
    IN_CHANNELS, HIDDEN, EDGE_DIM, NUM_LAYERS = 4, 32, 4, 2

    key = jax.random.PRNGKey(0)
    kx, ke, ki, kp = jax.random.split(key, 4)

    x = jax.random.normal(kx, (N, IN_CHANNELS), jnp.float32)
    edge_attr = jax.random.normal(ke, (E, EDGE_DIM), jnp.float32)
    edge_index = jax.random.randint(ki, (2, E), 0, N, dtype=jnp.int32)

    params = init_params(kp, IN_CHANNELS, HIDDEN, EDGE_DIM, NUM_LAYERS)

    out = selector_forward(x, edge_index, edge_attr, params, use_norm=True)
    out = jax.block_until_ready(out)
    assert out.shape == (N, 1) and out.dtype == jnp.float32
    assert bool(jnp.all(jnp.isfinite(out)))
    print("KERNEL_OK")
</pallas_src>

<mosaic_0001>
module attributes {stable_mosaic.version = 11 : i64} {
  func.func @fused_selector_kernel(%arg0: memref<8x4xf32, #tpu.memory_space<vmem>>, %arg1: memref<8x8xbf16, #tpu.memory_space<vmem>>, %arg2: memref<8x4xf32, #tpu.memory_space<vmem>>, %arg3: memref<4x32xbf16, #tpu.memory_space<vmem>>, %arg4: memref<4x32xbf16, #tpu.memory_space<vmem>>, %arg5: memref<4x32xbf16, #tpu.memory_space<vmem>>, %arg6: memref<1x32xf32, #tpu.memory_space<vmem>>, %arg7: memref<1x32xf32, #tpu.memory_space<vmem>>, %arg8: memref<1x32xf32, #tpu.memory_space<vmem>>, %arg9: memref<32x32xbf16, #tpu.memory_space<vmem>>, %arg10: memref<32x32xbf16, #tpu.memory_space<vmem>>, %arg11: memref<4x32xbf16, #tpu.memory_space<vmem>>, %arg12: memref<1x32xf32, #tpu.memory_space<vmem>>, %arg13: memref<1x32xf32, #tpu.memory_space<vmem>>, %arg14: memref<1x32xf32, #tpu.memory_space<vmem>>, %arg15: memref<32x32xbf16, #tpu.memory_space<vmem>>, %arg16: memref<1x32xf32, #tpu.memory_space<vmem>>, %arg17: memref<1x32xf32, #tpu.memory_space<vmem>>, %arg18: memref<1x1xf32, #tpu.memory_space<vmem>>, %arg19: memref<8x1xf32, #tpu.memory_space<vmem>>) attributes {dimension_semantics = [], scalar_prefetch = 0 : i64, scratch_operands = 0 : i64, tpu.core_type = #tpu.core_type<tc>} {
    %c0 = arith.constant 0 : index
    %c0_0 = arith.constant 0 : index
    %0 = vector.load %arg1[%c0, %c0_0] : memref<8x8xbf16, #tpu.memory_space<vmem>>, vector<8x8xbf16>
    %c0_1 = arith.constant 0 : index
    %c0_2 = arith.constant 0 : index
    %1 = vector.load %arg2[%c0_1, %c0_2] : memref<8x4xf32, #tpu.memory_space<vmem>>, vector<8x4xf32>
    %2 = arith.truncf %1 : vector<8x4xf32> to vector<8x4xbf16>
    %c0_3 = arith.constant 0 : index
    %c0_4 = arith.constant 0 : index
    %3 = vector.load %arg0[%c0_3, %c0_4] : memref<8x4xf32, #tpu.memory_space<vmem>>, vector<8x4xf32>
    %4 = arith.truncf %3 : vector<8x4xf32> to vector<8x4xbf16>
    %cst = arith.constant dense<0.000000e+00> : vector<8x4xf32>
    %5 = tpu.matmul %0, %4, %cst {dimension_numbers = #tpu.dot_dimension_numbers<[1], [0], [0], [1], [0, 0, 1, 1], [], []>} : vector<8x8xbf16>, vector<8x4xbf16>, vector<8x4xf32> -> vector<8x4xf32>
    %c0_5 = arith.constant 0 : index
    %c0_6 = arith.constant 0 : index
    %6 = vector.load %arg3[%c0_5, %c0_6] : memref<4x32xbf16, #tpu.memory_space<vmem>>, vector<4x32xbf16>
    %cst_7 = arith.constant dense<0.000000e+00> : vector<8x32xf32>
    %7 = tpu.matmul %4, %6, %cst_7 {dimension_numbers = #tpu.dot_dimension_numbers<[1], [0], [0], [1], [0, 0, 1, 1], [], []>} : vector<8x4xbf16>, vector<4x32xbf16>, vector<8x32xf32> -> vector<8x32xf32>
    %8 = arith.truncf %5 : vector<8x4xf32> to vector<8x4xbf16>
    %c0_8 = arith.constant 0 : index
    %c0_9 = arith.constant 0 : index
    %9 = vector.load %arg4[%c0_8, %c0_9] : memref<4x32xbf16, #tpu.memory_space<vmem>>, vector<4x32xbf16>
    %cst_10 = arith.constant dense<0.000000e+00> : vector<8x32xf32>
    %10 = tpu.matmul %8, %9, %cst_10 {dimension_numbers = #tpu.dot_dimension_numbers<[1], [0], [0], [1], [0, 0, 1, 1], [], []>} : vector<8x4xbf16>, vector<4x32xbf16>, vector<8x32xf32> -> vector<8x32xf32>
    %11 = arith.addf %7, %10 : vector<8x32xf32>
    %c0_11 = arith.constant 0 : index
    %c0_12 = arith.constant 0 : index
    %12 = vector.load %arg5[%c0_11, %c0_12] : memref<4x32xbf16, #tpu.memory_space<vmem>>, vector<4x32xbf16>
    %cst_13 = arith.constant dense<0.000000e+00> : vector<8x32xf32>
    %13 = tpu.matmul %2, %12, %cst_13 {dimension_numbers = #tpu.dot_dimension_numbers<[1], [0], [0], [1], [0, 0, 1, 1], [], []>} : vector<8x4xbf16>, vector<4x32xbf16>, vector<8x32xf32> -> vector<8x32xf32>
    %14 = arith.addf %11, %13 : vector<8x32xf32>
    %c0_14 = arith.constant 0 : index
    %c0_15 = arith.constant 0 : index
    %15 = vector.load %arg6[%c0_14, %c0_15] : memref<1x32xf32, #tpu.memory_space<vmem>>, vector<1x32xf32>
    %16 = vector.broadcast %15 : vector<1x32xf32> to vector<8x32xf32>
    %17 = arith.addf %14, %16 : vector<8x32xf32>
    %cst_16 = arith.constant dense<0.000000e+00> : vector<8xf32>
    %18 = vector.multi_reduction <add>, %17, %cst_16 [1] : vector<8x32xf32> to vector<8xf32>
    %19 = vector.shape_cast %18 : vector<8xf32> to vector<8x1xf32>
    %cst_17 = arith.constant 3.200000e+01 : f32
    %20 = vector.broadcast %cst_17 : f32 to vector<8x1xf32>
    %21 = arith.divf %19, %20 : vector<8x1xf32>
    %22 = arith.mulf %17, %17 : vector<8x32xf32>
    %cst_18 = arith.constant dense<0.000000e+00> : vector<8xf32>
    %23 = vector.multi_reduction <add>, %22, %cst_18 [1] : vector<8x32xf32> to vector<8xf32>
    %24 = vector.shape_cast %23 : vector<8xf32> to vector<8x1xf32>
    %cst_19 = arith.constant 3.200000e+01 : f32
    %25 = vector.broadcast %cst_19 : f32 to vector<8x1xf32>
    %26 = arith.divf %24, %25 : vector<8x1xf32>
    %27 = arith.mulf %21, %21 : vector<8x1xf32>
    %28 = arith.subf %26, %27 : vector<8x1xf32>
    %29 = vector.broadcast %21 : vector<8x1xf32> to vector<8x32xf32>
    %30 = arith.subf %17, %29 : vector<8x32xf32>
    %cst_20 = arith.constant 9.99999974E-6 : f32
    %31 = vector.broadcast %cst_20 : f32 to vector<8x1xf32>
    %32 = arith.addf %28, %31 : vector<8x1xf32>
    %33 = math.rsqrt %32 : vector<8x1xf32>
    %34 = vector.broadcast %33 : vector<8x1xf32> to vector<8x32xf32>
    %35 = arith.mulf %30, %34 : vector<8x32xf32>
    %c0_21 = arith.constant 0 : index
    %c0_22 = arith.constant 0 : index
    %36 = vector.load %arg7[%c0_21, %c0_22] : memref<1x32xf32, #tpu.memory_space<vmem>>, vector<1x32xf32>
    %37 = vector.broadcast %36 : vector<1x32xf32> to vector<8x32xf32>
    %38 = arith.mulf %35, %37 : vector<8x32xf32>
    %c0_23 = arith.constant 0 : index
    %c0_24 = arith.constant 0 : index
    %39 = vector.load %arg8[%c0_23, %c0_24] : memref<1x32xf32, #tpu.memory_space<vmem>>, vector<1x32xf32>
    %40 = vector.broadcast %39 : vector<1x32xf32> to vector<8x32xf32>
    %41 = arith.addf %38, %40 : vector<8x32xf32>
    %cst_25 = arith.constant 0.000000e+00 : f32
    %42 = vector.broadcast %cst_25 : f32 to vector<8x32xf32>
    %43 = arith.maximumf %41, %42 : vector<8x32xf32>
    %44 = arith.truncf %43 : vector<8x32xf32> to vector<8x32xbf16>
    %cst_26 = arith.constant dense<0.000000e+00> : vector<8x32xf32>
    %45 = tpu.matmul %0, %44, %cst_26 {dimension_numbers = #tpu.dot_dimension_numbers<[1], [0], [0], [1], [0, 0, 1, 1], [], []>} : vector<8x8xbf16>, vector<8x32xbf16>, vector<8x32xf32> -> vector<8x32xf32>
    %c0_27 = arith.constant 0 : index
    %c0_28 = arith.constant 0 : index
    %46 = vector.load %arg9[%c0_27, %c0_28] : memref<32x32xbf16, #tpu.memory_space<vmem>>, vector<32x32xbf16>
    %cst_29 = arith.constant dense<0.000000e+00> : vector<8x32xf32>
    %47 = tpu.matmul %44, %46, %cst_29 {dimension_numbers = #tpu.dot_dimension_numbers<[1], [0], [0], [1], [0, 0, 1, 1], [], []>} : vector<8x32xbf16>, vector<32x32xbf16>, vector<8x32xf32> -> vector<8x32xf32>
    %48 = arith.truncf %45 : vector<8x32xf32> to vector<8x32xbf16>
    %c0_30 = arith.constant 0 : index
    %c0_31 = arith.constant 0 : index
    %49 = vector.load %arg10[%c0_30, %c0_31] : memref<32x32xbf16, #tpu.memory_space<vmem>>, vector<32x32xbf16>
    %cst_32 = arith.constant dense<0.000000e+00> : vector<8x32xf32>
    %50 = tpu.matmul %48, %49, %cst_32 {dimension_numbers = #tpu.dot_dimension_numbers<[1], [0], [0], [1], [0, 0, 1, 1], [], []>} : vector<8x32xbf16>, vector<32x32xbf16>, vector<8x32xf32> -> vector<8x32xf32>
    %51 = arith.addf %47, %50 : vector<8x32xf32>
    %c0_33 = arith.constant 0 : index
    %c0_34 = arith.constant 0 : index
    %52 = vector.load %arg11[%c0_33, %c0_34] : memref<4x32xbf16, #tpu.memory_space<vmem>>, vector<4x32xbf16>
    %cst_35 = arith.constant dense<0.000000e+00> : vector<8x32xf32>
    %53 = tpu.matmul %2, %52, %cst_35 {dimension_numbers = #tpu.dot_dimension_numbers<[1], [0], [0], [1], [0, 0, 1, 1], [], []>} : vector<8x4xbf16>, vector<4x32xbf16>, vector<8x32xf32> -> vector<8x32xf32>
    %54 = arith.addf %51, %53 : vector<8x32xf32>
    %c0_36 = arith.constant 0 : index
    %c0_37 = arith.constant 0 : index
    %55 = vector.load %arg12[%c0_36, %c0_37] : memref<1x32xf32, #tpu.memory_space<vmem>>, vector<1x32xf32>
    %56 = vector.broadcast %55 : vector<1x32xf32> to vector<8x32xf32>
    %57 = arith.addf %54, %56 : vector<8x32xf32>
    %cst_38 = arith.constant dense<0.000000e+00> : vector<8xf32>
    %58 = vector.multi_reduction <add>, %57, %cst_38 [1] : vector<8x32xf32> to vector<8xf32>
    %59 = vector.shape_cast %58 : vector<8xf32> to vector<8x1xf32>
    %cst_39 = arith.constant 3.200000e+01 : f32
    %60 = vector.broadcast %cst_39 : f32 to vector<8x1xf32>
    %61 = arith.divf %59, %60 : vector<8x1xf32>
    %62 = arith.mulf %57, %57 : vector<8x32xf32>
    %cst_40 = arith.constant dense<0.000000e+00> : vector<8xf32>
    %63 = vector.multi_reduction <add>, %62, %cst_40 [1] : vector<8x32xf32> to vector<8xf32>
    %64 = vector.shape_cast %63 : vector<8xf32> to vector<8x1xf32>
    %cst_41 = arith.constant 3.200000e+01 : f32
    %65 = vector.broadcast %cst_41 : f32 to vector<8x1xf32>
    %66 = arith.divf %64, %65 : vector<8x1xf32>
    %67 = arith.mulf %61, %61 : vector<8x1xf32>
    %68 = arith.subf %66, %67 : vector<8x1xf32>
    %69 = vector.broadcast %61 : vector<8x1xf32> to vector<8x32xf32>
    %70 = arith.subf %57, %69 : vector<8x32xf32>
    %cst_42 = arith.constant 9.99999974E-6 : f32
    %71 = vector.broadcast %cst_42 : f32 to vector<8x1xf32>
    %72 = arith.addf %68, %71 : vector<8x1xf32>
    %73 = math.rsqrt %72 : vector<8x1xf32>
    %74 = vector.broadcast %73 : vector<8x1xf32> to vector<8x32xf32>
    %75 = arith.mulf %70, %74 : vector<8x32xf32>
    %c0_43 = arith.constant 0 : index
    %c0_44 = arith.constant 0 : index
    %76 = vector.load %arg13[%c0_43, %c0_44] : memref<1x32xf32, #tpu.memory_space<vmem>>, vector<1x32xf32>
    %77 = vector.broadcast %76 : vector<1x32xf32> to vector<8x32xf32>
    %78 = arith.mulf %75, %77 : vector<8x32xf32>
    %c0_45 = arith.constant 0 : index
    %c0_46 = arith.constant 0 : index
    %79 = vector.load %arg14[%c0_45, %c0_46] : memref<1x32xf32, #tpu.memory_space<vmem>>, vector<1x32xf32>
    %80 = vector.broadcast %79 : vector<1x32xf32> to vector<8x32xf32>
    %81 = arith.addf %78, %80 : vector<8x32xf32>
    %cst_47 = arith.constant 0.000000e+00 : f32
    %82 = vector.broadcast %cst_47 : f32 to vector<8x32xf32>
    %83 = arith.maximumf %81, %82 : vector<8x32xf32>
    %84 = arith.truncf %83 : vector<8x32xf32> to vector<8x32xbf16>
    %c0_48 = arith.constant 0 : index
    %c0_49 = arith.constant 0 : index
    %85 = vector.load %arg15[%c0_48, %c0_49] : memref<32x32xbf16, #tpu.memory_space<vmem>>, vector<32x32xbf16>
    %cst_50 = arith.constant dense<0.000000e+00> : vector<8x32xf32>
    %86 = tpu.matmul %84, %85, %cst_50 {dimension_numbers = #tpu.dot_dimension_numbers<[1], [0], [0], [1], [0, 0, 1, 1], [], []>} : vector<8x32xbf16>, vector<32x32xbf16>, vector<8x32xf32> -> vector<8x32xf32>
    %c0_51 = arith.constant 0 : index
    %c0_52 = arith.constant 0 : index
    %87 = vector.load %arg16[%c0_51, %c0_52] : memref<1x32xf32, #tpu.memory_space<vmem>>, vector<1x32xf32>
    %88 = vector.broadcast %87 : vector<1x32xf32> to vector<8x32xf32>
    %89 = arith.addf %86, %88 : vector<8x32xf32>
    %cst_53 = arith.constant 0.000000e+00 : f32
    %90 = vector.broadcast %cst_53 : f32 to vector<8x32xf32>
    %91 = arith.maximumf %89, %90 : vector<8x32xf32>
    %c0_54 = arith.constant 0 : index
    %c0_55 = arith.constant 0 : index
    %92 = vector.load %arg17[%c0_54, %c0_55] : memref<1x32xf32, #tpu.memory_space<vmem>>, vector<1x32xf32>
    %93 = vector.broadcast %92 : vector<1x32xf32> to vector<8x32xf32>
    %94 = arith.mulf %91, %93 : vector<8x32xf32>
    %cst_56 = arith.constant dense<0.000000e+00> : vector<8xf32>
    %95 = vector.multi_reduction <add>, %94, %cst_56 [1] : vector<8x32xf32> to vector<8xf32>
    %96 = vector.shape_cast %95 : vector<8xf32> to vector<8x1xf32>
    %c0_57 = arith.constant 0 : index
    %c0_58 = arith.constant 0 : index
    %97 = vector.load %arg18[%c0_57, %c0_58] : memref<1x1xf32, #tpu.memory_space<vmem>>, vector<1x1xf32>
    %98 = vector.broadcast %97 : vector<1x1xf32> to vector<8x1xf32>
    %99 = arith.addf %96, %98 : vector<8x1xf32>
    %c0_59 = arith.constant 0 : index
    %c0_60 = arith.constant 0 : index
    %100 = vector.load %arg19[%c0_59, %c0_60] : memref<8x1xf32, #tpu.memory_space<vmem>>, vector<8x1xf32>
    tpu.vector_store %arg19[%c0_59, %c0_60], %99 {strides = array<i32>} : memref<8x1xf32, #tpu.memory_space<vmem>>, vector<8x1xf32>,
    return
  }
}

</mosaic_0001>

<llo_original>
// kernel: tpu_custom_call.1
$region0: #{tpu_custom_call.1}
  #allocation0 [shape = 'u32[]', space=smem, size = 0x4, offset = 0x4, fixed_abs, tag = 'smem constant byte address 0x4 - core index']
  #allocation1 [shape = 'u32[144,128]{1,0:T(1,128)}', space=vmem, size = 0x12000, scoped, tag = 'internal scratch']
  #allocation2 [shape = 'f32[1,1]{1,0:T(1,128)S(1)}', space=vmem, size = 0x200, scoped, tag = 'scoped memory for tpu_custom_call.1']
  %s0 = inlined_call_operand.vmem [shape: f32[8,4], index: 0, kind: input, shape index: {}]
  %s1 = inlined_call_operand.hbm [shape: bf16[8,8], index: 1, kind: input, shape index: {}]
  %s2 = inlined_call_operand.vmem [shape: f32[8,4], index: 2, kind: input, shape index: {}]
  %s3 = inlined_call_operand.hbm [shape: bf16[4,32], index: 3, kind: input, shape index: {}]
  %s4 = inlined_call_operand.hbm [shape: bf16[4,32], index: 4, kind: input, shape index: {}]
  %s5 = inlined_call_operand.hbm [shape: bf16[4,32], index: 5, kind: input, shape index: {}]
  %s6 = inlined_call_operand.vmem [shape: f32[1,32], index: 6, kind: input, shape index: {}]
  %s7 = inlined_call_operand.hbm [shape: f32[1,32], index: 7, kind: input, shape index: {}]
  %s8 = inlined_call_operand.hbm [shape: f32[1,32], index: 8, kind: input, shape index: {}]
  %s9 = inlined_call_operand.vmem [shape: bf16[32,32], index: 9, kind: input, shape index: {}]
  %s10 = inlined_call_operand.vmem [shape: bf16[32,32], index: 10, kind: input, shape index: {}]
  %s11 = inlined_call_operand.hbm [shape: bf16[4,32], index: 11, kind: input, shape index: {}]
  %s12 = inlined_call_operand.hbm [shape: f32[1,32], index: 12, kind: input, shape index: {}]
  %s13 = inlined_call_operand.hbm [shape: f32[1,32], index: 13, kind: input, shape index: {}]
  %s14 = inlined_call_operand.vmem [shape: f32[1,32], index: 14, kind: input, shape index: {}]
  %s15 = inlined_call_operand.vmem [shape: bf16[32,32], index: 15, kind: input, shape index: {}]
  %s16 = inlined_call_operand.vmem [shape: f32[1,32], index: 16, kind: input, shape index: {}]
  %s17 = inlined_call_operand.vmem [shape: f32[1,32], index: 17, kind: input, shape index: {}]
  %s18 = inlined_call_operand.<no memory space> [shape: f32[1,1], index: 18, kind: input, shape index: {}]
  %s19 = inlined_call_operand.vmem [shape: f32[8,1], index: 19, kind: output, shape index: {}]
  %s20 = sld [smem:[#allocation0]]
  $region122: #{tpu_custom_call.1} parent=0
    _
  %s22 = ssub.s32 1, %s20
  %s23 = scalar_select 0, %s22, %s20
  %v24 = vstv %s18
  %25 = vst [vmem:[#allocation2] sm:$0x1] %v24
  $region1: #{tpu_custom_call.1} parent=0
    #allocation3 [shape = 'u8[2048]{0}', space=vmem, size = 0x800, scoped, tag = 'input window, operand 1, single buffered']
    #allocation4 [shape = 's32[1]{0}', space=sflag, size = 0x4, scoped, tag = 'scoped memory for tpu_custom_call.1']
    #allocation5 [shape = 'u8[1024]{0}', space=vmem, size = 0x400, scoped, tag = 'input window, operand 3, single buffered']
    #allocation6 [shape = 's32[1]{0}', space=sflag, size = 0x4, scoped, tag = 'scoped memory for tpu_custom_call.1']
    #allocation7 [shape = 'u8[1024]{0}', space=vmem, size = 0x400, scoped, tag = 'input window, operand 4, single buffered']
    #allocation8 [shape = 'u8[1024]{0}', space=vmem, size = 0x400, scoped, tag = 'input window, operand 5, single buffered']
    #allocation9 [shape = 's32[1]{0}', space=sflag, size = 0x4, scoped, tag = 'scoped memory for tpu_custom_call.1']
    #allocation10 [shape = 'u8[512]{0}', space=vmem, size = 0x400, scoped, tag = 'input window, operand 7, single buffered']
    #allocation11 [shape = 'u8[512]{0}', space=vmem, size = 0x400, scoped, tag = 'input window, operand 8, single buffered']
    #allocation12 [shape = 's32[1]{0}', space=sflag, size = 0x4, scoped, tag = 'scoped memory for tpu_custom_call.1']
    #allocation13 [shape = 'u8[1024]{0}', space=vmem, size = 0x400, scoped, tag = 'input window, operand 11, single buffered']
    #allocation14 [shape = 'u8[512]{0}', space=vmem, size = 0x400, scoped, tag = 'input window, operand 12, single buffered']
    #allocation15 [shape = 's32[1]{0}', space=sflag, size = 0x4, scoped, tag = 'scoped memory for tpu_custom_call.1']
    #allocation16 [shape = 'u8[512]{0}', space=vmem, size = 0x400, scoped, tag = 'input window, operand 13, single buffered']
    %26 = vsyncpa [#allocation4], 0
    %27 = vsyncpa [#allocation6], 0
    %28 = vsyncpa [#allocation9], 0
    %29 = vsyncpa [#allocation12], 0
    %30 = vsyncpa [#allocation15], 0
    // Predicated region
    $region2: #{tpu_custom_call.1} parent=1 // pred_check
      _
    $region3: #{tpu_custom_call.1} parent=1 // pred_check_branch
      %32 = sbr.rel (0) target = $region5
    $region4: #{tpu_custom_call.1} parent=1 // pred_region
      _
    $region5: #{tpu_custom_call.1} parent=1 // pred_fallthru
      _
    // Predicated region
    $region6: #{tpu_custom_call.1} parent=1 // pred_check
      _
    $region7: #{tpu_custom_call.1} parent=1 // pred_check_branch
      %34 = sbr.rel (0) target = $region9
    $region8: #{tpu_custom_call.1} parent=1 // pred_region
      %s36 = ssub.s32 64, 64
      %37 = vsyncadd [#allocation4], %s36
      %s39 = sshll.u32 [#allocation3], 4
      %s40 = int_to_ptr.vmem [resolvable:$true] %s39
      %42 = dma.hbm_to_vmem [thread:$0]  %s1, 64, %s40, [#allocation4]
    $region9: #{tpu_custom_call.1} parent=1 // pred_fallthru
      _
    // Predicated region
    $region10: #{tpu_custom_call.1} parent=1 // pred_check
      _
    $region11: #{tpu_custom_call.1} parent=1 // pred_check_branch
      %44 = sbr.rel (0) target = $region13
    $region12: #{tpu_custom_call.1} parent=1 // pred_region
      _
    $region13: #{tpu_custom_call.1} parent=1 // pred_fallthru
      _
    // Predicated region
    $region14: #{tpu_custom_call.1} parent=1 // pred_check
      _
    $region15: #{tpu_custom_call.1} parent=1 // pred_check_branch
      %46 = sbr.rel (0) target = $region17
    $region16: #{tpu_custom_call.1} parent=1 // pred_region
      %s48 = ssub.s32 32, 32
      %49 = vsyncadd [#allocation6], %s48
      %s51 = sshll.u32 [#allocation5], 4
      %s52 = int_to_ptr.vmem [resolvable:$true] %s51
      %54 = dma.hbm_to_vmem [thread:$0]  %s3, 32, %s52, [#allocation6]
    $region17: #{tpu_custom_call.1} parent=1 // pred_fallthru
      _
    // Predicated region
    $region18: #{tpu_custom_call.1} parent=1 // pred_check
      _
    $region19: #{tpu_custom_call.1} parent=1 // pred_check_branch
      %56 = sbr.rel (0) target = $region21
    $region20: #{tpu_custom_call.1} parent=1 // pred_region
      %s58 = ssub.s32 32, 32
      %59 = vsyncadd [#allocation6], %s58
      %s61 = sshll.u32 [#allocation7], 4
      %s62 = int_to_ptr.vmem [resolvable:$true] %s61
      %64 = dma.hbm_to_vmem [thread:$0]  %s4, 32, %s62, [#allocation6]
    $region21: #{tpu_custom_call.1} parent=1 // pred_fallthru
      _
    // Predicated region
    $region22: #{tpu_custom_call.1} parent=1 // pred_check
      _
    $region23: #{tpu_custom_call.1} parent=1 // pred_check_branch
      %66 = sbr.rel (0) target = $region25
    $region24: #{tpu_custom_call.1} parent=1 // pred_region
      %s68 = ssub.s32 32, 32
      %69 = vsyncadd [#allocation9], %s68
      %s71 = sshll.u32 [#allocation8], 4
      %s72 = int_to_ptr.vmem [resolvable:$true] %s71
      %74 = dma.hbm_to_vmem [thread:$0]  %s5, 32, %s72, [#allocation9]
    $region25: #{tpu_custom_call.1} parent=1 // pred_fallthru
      _
    // Predicated region
    $region26: #{tpu_custom_call.1} parent=1 // pred_check
      _
    $region27: #{tpu_custom_call.1} parent=1 // pred_check_branch
      %76 = sbr.rel (0) target = $region29
    $region28: #{tpu_custom_call.1} parent=1 // pred_region
      _
    $region29: #{tpu_custom_call.1} parent=1 // pred_fallthru
      _
    // Predicated region
    $region30: #{tpu_custom_call.1} parent=1 // pred_check
      _
    $region31: #{tpu_custom_call.1} parent=1 // pred_check_branch
      %78 = sbr.rel (0) target = $region33
    $region32: #{tpu_custom_call.1} parent=1 // pred_region
      %s80 = ssub.s32 16, 16
      %81 = vsyncadd [#allocation9], %s80
      %s83 = sshll.u32 [#allocation10], 4
      %s84 = int_to_ptr.vmem [resolvable:$true] %s83
      %86 = dma.hbm_to_vmem [thread:$0]  %s7, 16, %s84, [#allocation9]
    $region33: #{tpu_custom_call.1} parent=1 // pred_fallthru
      _
    // Predicated region
    $region34: #{tpu_custom_call.1} parent=1 // pred_check
      _
    $region35: #{tpu_custom_call.1} parent=1 // pred_check_branch
      %88 = sbr.rel (0) target = $region37
    $region36: #{tpu_custom_call.1} parent=1 // pred_region
      %s90 = ssub.s32 16, 16
      %91 = vsyncadd [#allocation12], %s90
      %s93 = sshll.u32 [#allocation11], 4
      %s94 = int_to_ptr.vmem [resolvable:$true] %s93
      %96 = dma.hbm_to_vmem [thread:$0]  %s8, 16, %s94, [#allocation12]
    $region37: #{tpu_custom_call.1} parent=1 // pred_fallthru
      _
    // Predicated region
    $region38: #{tpu_custom_call.1} parent=1 // pred_check
      _
    $region39: #{tpu_custom_call.1} parent=1 // pred_check_branch
      %98 = sbr.rel (0) target = $region41
    $region40: #{tpu_custom_call.1} parent=1 // pred_region
      _
    $region41: #{tpu_custom_call.1} parent=1 // pred_fallthru
      _
    // Predicated region
    $region42: #{tpu_custom_call.1} parent=1 // pred_check
      _
    $region43: #{tpu_custom_call.1} parent=1 // pred_check_branch
      %100 = sbr.rel (0) target = $region45
    $region44: #{tpu_custom_call.1} parent=1 // pred_region
      _
    $region45: #{tpu_custom_call.1} parent=1 // pred_fallthru
      _
    // Predicated region
    $region46: #{tpu_custom_call.1} parent=1 // pred_check
      _
    $region47: #{tpu_custom_call.1} parent=1 // pred_check_branch
      %102 = sbr.rel (0) target = $region49
    $region48: #{tpu_custom_call.1} parent=1 // pred_region
      %s104 = ssub.s32 32, 32
      %105 = vsyncadd [#allocation12], %s104
      %s107 = sshll.u32 [#allocation13], 4
      %s108 = int_to_ptr.vmem [resolvable:$true] %s107
      %110 = dma.hbm_to_vmem [thread:$0]  %s11, 32, %s108, [#allocation12]
    $region49: #{tpu_custom_call.1} parent=1 // pred_fallthru
      _
    // Predicated region
    $region50: #{tpu_custom_call.1} parent=1 // pred_check
      _
    $region51: #{tpu_custom_call.1} parent=1 // pred_check_branch
      %112 = sbr.rel (0) target = $region53
    $region52: #{tpu_custom_call.1} parent=1 // pred_region
      %s114 = ssub.s32 16, 16
      %115 = vsyncadd [#allocation15], %s114
      %s117 = sshll.u32 [#allocation14], 4
      %s118 = int_to_ptr.vmem [resolvable:$true] %s117
      %120 = dma.hbm_to_vmem [thread:$0]  %s12, 16, %s118, [#allocation15]
    $region53: #{tpu_custom_call.1} parent=1 // pred_fallthru
      _
    // Predicated region
    $region54: #{tpu_custom_call.1} parent=1 // pred_check
      _
    $region55: #{tpu_custom_call.1} parent=1 // pred_check_branch
      %122 = sbr.rel (0) target = $region57
    $region56: #{tpu_custom_call.1} parent=1 // pred_region
      %s124 = ssub.s32 16, 16
      %125 = vsyncadd [#allocation15], %s124
      %s127 = sshll.u32 [#allocation16], 4
      %s128 = int_to_ptr.vmem [resolvable:$true] %s127
      %130 = dma.hbm_to_vmem [thread:$0]  %s13, 16, %s128, [#allocation15]
    $region57: #{tpu_custom_call.1} parent=1 // pred_fallthru
      _
    // Predicated region
    $region58: #{tpu_custom_call.1} parent=1 // pred_check
      _
    $region59: #{tpu_custom_call.1} parent=1 // pred_check_branch
      %132 = sbr.rel (0) target = $region61
    $region60: #{tpu_custom_call.1} parent=1 // pred_region
      _
    $region61: #{tpu_custom_call.1} parent=1 // pred_fallthru
      _
    // Predicated region
    $region62: #{tpu_custom_call.1} parent=1 // pred_check
      _
    $region63: #{tpu_custom_call.1} parent=1 // pred_check_branch
      %134 = sbr.rel (0) target = $region65
    $region64: #{tpu_custom_call.1} parent=1 // pred_region
      _
    $region65: #{tpu_custom_call.1} parent=1 // pred_fallthru
      _
    // Predicated region
    $region66: #{tpu_custom_call.1} parent=1 // pred_check
      _
    $region67: #{tpu_custom_call.1} parent=1 // pred_check_branch
      %136 = sbr.rel (0) target = $region69
    $region68: #{tpu_custom_call.1} parent=1 // pred_region
      _
    $region69: #{tpu_custom_call.1} parent=1 // pred_fallthru
      _
    // Predicated region
    $region70: #{tpu_custom_call.1} parent=1 // pred_check
      _
    $region71: #{tpu_custom_call.1} parent=1 // pred_check_branch
      %138 = sbr.rel (0) target = $region73
    $region72: #{tpu_custom_call.1} parent=1 // pred_region
      _
    $region73: #{tpu_custom_call.1} parent=1 // pred_fallthru
      _
    // Predicated region
    $region74: #{tpu_custom_call.1} parent=1 // pred_check
      _
    $region75: #{tpu_custom_call.1} parent=1 // pred_check_branch
      %140 = sbr.rel (0) target = $region77
    $region76: #{tpu_custom_call.1} parent=1 // pred_region
      _
    $region77: #{tpu_custom_call.1} parent=1 // pred_fallthru
      _
    // Predicated region
    $region78: #{tpu_custom_call.1} parent=1 // pred_check
      _
    $region79: #{tpu_custom_call.1} parent=1 // pred_check_branch
      %142 = sbr.rel (0) target = $region81
    $region80: #{tpu_custom_call.1} parent=1 // pred_region
      %143 = dma.done [#allocation4], 64
    $region81: #{tpu_custom_call.1} parent=1 // pred_fallthru
      _
    // Predicated region
    $region82: #{tpu_custom_call.1} parent=1 // pred_check
      _
    $region83: #{tpu_custom_call.1} parent=1 // pred_check_branch
      %145 = sbr.rel (0) target = $region85
    $region84: #{tpu_custom_call.1} parent=1 // pred_region
      %146 = dma.done [#allocation6], 32
    $region85: #{tpu_custom_call.1} parent=1 // pred_fallthru
      _
    // Predicated region
    $region86: #{tpu_custom_call.1} parent=1 // pred_check
      _
    $region87: #{tpu_custom_call.1} parent=1 // pred_check_branch
      %148 = sbr.rel (0) target = $region89
    $region88: #{tpu_custom_call.1} parent=1 // pred_region
      %149 = dma.done [#allocation6], 32
    $region89: #{tpu_custom_call.1} parent=1 // pred_fallthru
      _
    // Predicated region
    $region90: #{tpu_custom_call.1} parent=1 // pred_check
      _
    $region91: #{tpu_custom_call.1} parent=1 // pred_check_branch
      %151 = sbr.rel (0) target = $region93
    $region92: #{tpu_custom_call.1} parent=1 // pred_region
      %152 = dma.done [#allocation9], 32
    $region93: #{tpu_custom_call.1} parent=1 // pred_fallthru
      _
    // Predicated region
    $region94: #{tpu_custom_call.1} parent=1 // pred_check
      _
    $region95: #{tpu_custom_call.1} parent=1 // pred_check_branch
      %154 = sbr.rel (0) target = $region97
    $region96: #{tpu_custom_call.1} parent=1 // pred_region
      %155 = dma.done [#allocation9], 16
    $region97: #{tpu_custom_call.1} parent=1 // pred_fallthru
      _
    // Predicated region
    $region98: #{tpu_custom_call.1} parent=1 // pred_check
      _
    $region99: #{tpu_custom_call.1} parent=1 // pred_check_branch
      %157 = sbr.rel (0) target = $region101
    $region100: #{tpu_custom_call.1} parent=1 // pred_region
      %158 = dma.done [#allocation12], 16
    $region101: #{tpu_custom_call.1} parent=1 // pred_fallthru
      _
    // Predicated region
    $region102: #{tpu_custom_call.1} parent=1 // pred_check
      _
    $region103: #{tpu_custom_call.1} parent=1 // pred_check_branch
      %160 = sbr.rel (0) target = $region105
    $region104: #{tpu_custom_call.1} parent=1 // pred_region
      %161 = dma.done [#allocation12], 32
    $region105: #{tpu_custom_call.1} parent=1 // pred_fallthru
      _
    // Predicated region
    $region106: #{tpu_custom_call.1} parent=1 // pred_check
      _
    $region107: #{tpu_custom_call.1} parent=1 // pred_check_branch
      %163 = sbr.rel (0) target = $region109
    $region108: #{tpu_custom_call.1} parent=1 // pred_region
      %164 = dma.done [#allocation15], 16
    $region109: #{tpu_custom_call.1} parent=1 // pred_fallthru
      _
    // Predicated region
    $region110: #{tpu_custom_call.1} parent=1 // pred_check
      _
    $region111: #{tpu_custom_call.1} parent=1 // pred_check_branch
      %166 = sbr.rel (0) target = $region113
    $region112: #{tpu_custom_call.1} parent=1 // pred_region
      %167 = dma.done [#allocation15], 16
    $region113: #{tpu_custom_call.1} parent=1 // pred_fallthru
      _
    %v169 = vld [vmem:[#allocation3] sm:$0xf]
    %v170 = vld [vmem:[%s2] sm:$0xff]
    %v171 = vpack.c.bf16 %v170, %v170
    %v172 = vld [vmem:[%s0] sm:$0xff]
    %v173 = vpack.c.bf16 %v172, %v172
    %vm174 = vcmask 64512
    %v176 = vsel %vm174, %v169, 0
    %vm178 = vcmask 1043456
    %v180 = vsel %vm178, %v173, 0
    %182 = vmatprep.subr.bf16.mxu0 0
    %183 = vmatpush1.bf16.msra.mxu0 0
    %184 = vmatprep.subr.bf16.mxu0 0
    %185 = vmatpush1.bf16.msra.mxu0 0
    %186 = vmatprep.subr.bf16.mxu0 0
    %187 = vmatpush1.bf16.msra.mxu0 0
    %188 = vmatprep.subr.bf16.mxu0 0
    %189 = vmatpush1.bf16.msra.mxu0 0
    %190 = vmatprep.subr.bf16.mxu0 0
    %191 = vmatpush1.bf16.msra.mxu0 0
    %192 = vmatprep.subr.bf16.mxu0 0
    %193 = vmatpush1.bf16.msra.mxu0 0
    %194 = vmatprep.subr.bf16.mxu0 0
    %195 = vmatpush1.bf16.msra.mxu0 0
    %196 = vmatprep.subr.bf16.mxu0 0
    %197 = vmatpush1.bf16.msra.mxu0 %v180
    %198 = vmatprep.subr.bf16.mxu0 0
    %199 = vmatpush2.bf16.msra.mxu0 0
    %200 = vmatprep.subr.bf16.mxu0 0
    %201 = vmatpush2.bf16.msra.mxu0 0
    %202 = vmatprep.subr.bf16.mxu0 0
    %203 = vmatpush2.bf16.msra.mxu0 0
    %204 = vmatprep.subr.bf16.mxu0 0
    %205 = vmatpush2.bf16.msra.mxu0 0
    %206 = vmatprep.subr.bf16.mxu0 0
    %207 = vmatpush2.bf16.msra.mxu0 0
    %208 = vmatprep.subr.bf16.mxu0 0
    %209 = vmatpush2.bf16.msra.mxu0 0
    %210 = vmatprep.subr.bf16.mxu0 0
    %211 = vmatpush2.bf16.msra.mxu0 0
    %212 = vmatprep.subr.bf16.mxu0 0
    %213 = vmatpush2.bf16.msra.mxu0 0
    %214 = vmatprep.mubr.bf16.mxu0 0
    %215 = vmatmul.mubr.bf16.gmra.mxu0 %v176
    %v216 = vpop.f32.mrf.mxu0
    %v217 = vadd.f32 0.0, %v216
    %v218 = vpop.f32.mrf.mxu0
    %v219 = vpop.f32.mrf.mxu0
    %v220 = vpop.f32.mrf.mxu0
    %221 = vdwg.mxu0
    %v222 = vld [vmem:[#allocation5] sm:$0x3]
    %v223 = vpack.c.bf16 %v217, %v217
    %v224 = vld [vmem:[#allocation7] sm:$0x3]
    %vm225 = vcmask 31744
    %v227 = vsel %vm225, %v223, 0
    %vm229 = vcmask 1041408
    %v231 = vsel %vm229, %v224, 0
    %233 = vmatprep.subr.bf16.mxu0 0
    %234 = vmatpush1.bf16.msra.mxu0 0
    %235 = vmatprep.subr.bf16.mxu0 0
    %236 = vmatpush1.bf16.msra.mxu0 0
    %237 = vmatprep.subr.bf16.mxu0 0
    %238 = vmatpush1.bf16.msra.mxu0 0
    %239 = vmatprep.subr.bf16.mxu0 0
    %240 = vmatpush1.bf16.msra.mxu0 0
    %241 = vmatprep.subr.bf16.mxu0 0
    %242 = vmatpush1.bf16.msra.mxu0 0
    %243 = vmatprep.subr.bf16.mxu0 0
    %244 = vmatpush1.bf16.msra.mxu0 0
    %245 = vmatprep.subr.bf16.mxu0 0
    %246 = vmatpush1.bf16.msra.mxu0 0
    %247 = vmatprep.subr.bf16.mxu0 0
    %248 = vmatpush1.bf16.msra.mxu0 %v231
    %249 = vmatprep.subr.bf16.mxu0 0
    %250 = vmatpush2.bf16.msra.mxu0 0
    %251 = vmatprep.subr.bf16.mxu0 0
    %252 = vmatpush2.bf16.msra.mxu0 0
    %253 = vmatprep.subr.bf16.mxu0 0
    %254 = vmatpush2.bf16.msra.mxu0 0
    %255 = vmatprep.subr.bf16.mxu0 0
    %256 = vmatpush2.bf16.msra.mxu0 0
    %257 = vmatprep.subr.bf16.mxu0 0
    %258 = vmatpush2.bf16.msra.mxu0 0
    %259 = vmatprep.subr.bf16.mxu0 0
    %260 = vmatpush2.bf16.msra.mxu0 0
    %261 = vmatprep.subr.bf16.mxu0 0
    %262 = vmatpush2.bf16.msra.mxu0 0
    %263 = vmatprep.subr.bf16.mxu0 0
    %264 = vmatpush2.bf16.msra.mxu0 0
    %265 = vmatprep.mubr.bf16.mxu0 0
    %266 = vmatmul.mubr.bf16.gmra.mxu0 %v227
    %v267 = vpop.f32.mrf.mxu0
    %v268 = vadd.f32 0.0, %v267
    %v269 = vpop.f32.mrf.mxu0
    %v270 = vpop.f32.mrf.mxu0
    %v271 = vpop.f32.mrf.mxu0
    %272 = vdwg.mxu0
    %v273 = vsel %vm225, %v173, 0
    %v276 = vsel %vm229, %v222, 0
    %278 = vmatprep.subr.bf16.mxu0 0
    %279 = vmatpush1.bf16.msra.mxu0 0
    %280 = vmatprep.subr.bf16.mxu0 0
    %281 = vmatpush1.bf16.msra.mxu0 0
    %282 = vmatprep.subr.bf16.mxu0 0
    %283 = vmatpush1.bf16.msra.mxu0 0
    %284 = vmatprep.subr.bf16.mxu0 0
    %285 = vmatpush1.bf16.msra.mxu0 0
    %286 = vmatprep.subr.bf16.mxu0 0
    %287 = vmatpush1.bf16.msra.mxu0 0
    %288 = vmatprep.subr.bf16.mxu0 0
    %289 = vmatpush1.bf16.msra.mxu0 0
    %290 = vmatprep.subr.bf16.mxu0 0
    %291 = vmatpush1.bf16.msra.mxu0 0
    %292 = vmatprep.subr.bf16.mxu0 0
    %293 = vmatpush1.bf16.msra.mxu0 %v276
    %294 = vmatprep.subr.bf16.mxu0 0
    %295 = vmatpush2.bf16.msra.mxu0 0
    %296 = vmatprep.subr.bf16.mxu0 0
    %297 = vmatpush2.bf16.msra.mxu0 0
    %298 = vmatprep.subr.bf16.mxu0 0
    %299 = vmatpush2.bf16.msra.mxu0 0
    %300 = vmatprep.subr.bf16.mxu0 0
    %301 = vmatpush2.bf16.msra.mxu0 0
    %302 = vmatprep.subr.bf16.mxu0 0
    %303 = vmatpush2.bf16.msra.mxu0 0
    %304 = vmatprep.subr.bf16.mxu0 0
    %305 = vmatpush2.bf16.msra.mxu0 0
    %306 = vmatprep.subr.bf16.mxu0 0
    %307 = vmatpush2.bf16.msra.mxu0 0
    %308 = vmatprep.subr.bf16.mxu0 0
    %309 = vmatpush2.bf16.msra.mxu0 0
    %310 = vmatprep.mubr.bf16.mxu0 0
    %311 = vmatmul.mubr.bf16.gmra.mxu0 %v273
    %v312 = vpop.f32.mrf.mxu0
    %v313 = vadd.f32 %v268, %v312
    %v314 = vpop.f32.mrf.mxu0
    %v315 = vpop.f32.mrf.mxu0
    %v316 = vpop.f32.mrf.mxu0
    %317 = vdwg.mxu0
    %v318 = vld [vmem:[#allocation8] sm:$0x3]
    %v320 = vsel %vm225, %v171, 0
    %v323 = vsel %vm229, %v318, 0
    %325 = vmatprep.subr.bf16.mxu0 0
    %326 = vmatpush1.bf16.msra.mxu0 0
    %327 = vmatprep.subr.bf16.mxu0 0
    %328 = vmatpush1.bf16.msra.mxu0 0
    %329 = vmatprep.subr.bf16.mxu0 0
    %330 = vmatpush1.bf16.msra.mxu0 0
    %331 = vmatprep.subr.bf16.mxu0 0
    %332 = vmatpush1.bf16.msra.mxu0 0
    %333 = vmatprep.subr.bf16.mxu0 0
    %334 = vmatpush1.bf16.msra.mxu0 0
    %335 = vmatprep.subr.bf16.mxu0 0
    %336 = vmatpush1.bf16.msra.mxu0 0
    %337 = vmatprep.subr.bf16.mxu0 0
    %338 = vmatpush1.bf16.msra.mxu0 0
    %339 = vmatprep.subr.bf16.mxu0 0
    %340 = vmatpush1.bf16.msra.mxu0 %v323
    %341 = vmatprep.subr.bf16.mxu0 0
    %342 = vmatpush2.bf16.msra.mxu0 0
    %343 = vmatprep.subr.bf16.mxu0 0
    %344 = vmatpush2.bf16.msra.mxu0 0
    %345 = vmatprep.subr.bf16.mxu0 0
    %346 = vmatpush2.bf16.msra.mxu0 0
    %347 = vmatprep.subr.bf16.mxu0 0
    %348 = vmatpush2.bf16.msra.mxu0 0
    %349 = vmatprep.subr.bf16.mxu0 0
    %350 = vmatpush2.bf16.msra.mxu0 0
    %351 = vmatprep.subr.bf16.mxu0 0
    %352 = vmatpush2.bf16.msra.mxu0 0
    %353 = vmatprep.subr.bf16.mxu0 0
    %354 = vmatpush2.bf16.msra.mxu0 0
    %355 = vmatprep.subr.bf16.mxu0 0
    %356 = vmatpush2.bf16.msra.mxu0 0
    %357 = vmatprep.mubr.bf16.mxu0 0
    %358 = vmatmul.mubr.bf16.gmra.mxu0 %v320
    %v359 = vpop.f32.mrf.mxu0
    %v360 = vadd.f32 0.0, %v359
    %v361 = vpop.f32.mrf.mxu0
    %v362 = vpop.f32.mrf.mxu0
    %v363 = vpop.f32.mrf.mxu0
    %364 = vdwg.mxu0
    %v365 = vadd.f32 %v313, %v360
    %v366 = vld [vmem:[%s6] sm:$0x1]
    %v368 = vlaneseq
    %v369 = vshrl.u32 %v368, 7
    %v370 = vsub.s32 0, %v369
    %v371 = vrot.slane %v366, %v370
    %v373 = vadd.f32 %v365, %v371
    %vm374 = vcmask 261120
    %v375 = vsel %vm374, %v373, 0.0
    %376 = vadd.xlane.f32.xlu0 %v375
    %v377 = vpop.xlane.xlu0 %376
    %v378 = vrcp.pop 32.0
    %v379 = vmul.f32 %v377, %v378
    %v380 = vmul.f32 %v373, %v373
    %v381 = vsel %vm374, %v380, 0.0
    %382 = vadd.xlane.f32.xlu0 %v381
    %v383 = vpop.xlane.xlu0 %382
    %v384 = vmul.f32 %v383, %v378
    %v385 = vmul.f32 %v379, %v379
    %v386 = vsub.f32 %v384, %v385
    %v387 = vsub.f32 %v373, %v379
    %v388 = vadd.f32 %v386, 1e-05
    %v389 = vrsqrt.pop %v388
    %v390 = vmul.f32 %v387, %v389
    %v391 = vld [vmem:[#allocation10] sm:$0x1]
    %v393 = vlaneseq
    %v394 = vshrl.u32 %v393, 7
    %v395 = vsub.s32 0, %v394
    %v396 = vrot.slane %v391, %v395
    %v398 = vmul.f32 %v390, %v396
    %v399 = vld [vmem:[#allocation11] sm:$0x1]
    %v401 = vlaneseq
    %v402 = vshrl.u32 %v401, 7
    %v403 = vsub.s32 0, %v402
    %v404 = vrot.slane %v399, %v403
    %v406 = vadd.f32 %v398, %v404
    %v407 = vmax.f32 %v406, 0.0
    %v408 = vpack.c.bf16 %v407, %v407
    %v410 = vsel %vm178, %v408, 0
    %412 = vmatprep.subr.bf16.mxu0 0
    %413 = vmatpush1.bf16.msra.mxu0 0
    %414 = vmatprep.subr.bf16.mxu0 0
    %415 = vmatpush1.bf16.msra.mxu0 0
    %416 = vmatprep.subr.bf16.mxu0 0
    %417 = vmatpush1.bf16.msra.mxu0 0
    %418 = vmatprep.subr.bf16.mxu0 0
    %419 = vmatpush1.bf16.msra.mxu0 0
    %420 = vmatprep.subr.bf16.mxu0 0
    %421 = vmatpush1.bf16.msra.mxu0 0
    %422 = vmatprep.subr.bf16.mxu0 0
    %423 = vmatpush1.bf16.msra.mxu0 0
    %424 = vmatprep.subr.bf16.mxu0 0
    %425 = vmatpush1.bf16.msra.mxu0 0
    %426 = vmatprep.subr.bf16.mxu0 0
    %427 = vmatpush1.bf16.msra.mxu0 %v410
    %428 = vmatprep.subr.bf16.mxu0 0
    %429 = vmatpush2.bf16.msra.mxu0 0
    %430 = vmatprep.subr.bf16.mxu0 0
    %431 = vmatpush2.bf16.msra.mxu0 0
    %432 = vmatprep.subr.bf16.mxu0 0
    %433 = vmatpush2.bf16.msra.mxu0 0
    %434 = vmatprep.subr.bf16.mxu0 0
    %435 = vmatpush2.bf16.msra.mxu0 0
    %436 = vmatprep.subr.bf16.mxu0 0
    %437 = vmatpush2.bf16.msra.mxu0 0
    %438 = vmatprep.subr.bf16.mxu0 0
    %439 = vmatpush2.bf16.msra.mxu0 0
    %440 = vmatprep.subr.bf16.mxu0 0
    %441 = vmatpush2.bf16.msra.mxu0 0
    %442 = vmatprep.subr.bf16.mxu0 0
    %443 = vmatpush2.bf16.msra.mxu0 0
    %444 = vmatprep.mubr.bf16.mxu0 0
    %445 = vmatmul.mubr.bf16.gmra.mxu0 %v176
    %v446 = vpop.f32.mrf.mxu0
    %v447 = vadd.f32 0.0, %v446
    %v448 = vpop.f32.mrf.mxu0
    %v449 = vpop.f32.mrf.mxu0
    %v450 = vpop.f32.mrf.mxu0
    %451 = vdwg.mxu0
    %v452 = vld [vmem:[%s9] sm:$0xf]
    %v453 = vld [vmem:[%s9 + $0x4] sm:$0xf]
    %v454 = vld [vmem:[%s9 + $0x8] sm:$0xf]
    %v455 = vld [vmem:[%s9 + $0xc] sm:$0xf]
    %v456 = vpack.c.bf16 %v447, %v447
    %v457 = vld [vmem:[%s10] sm:$0xf]
    %v458 = vld [vmem:[%s10 + $0x4] sm:$0xf]
    %v459 = vld [vmem:[%s10 + $0x8] sm:$0xf]
    %v460 = vld [vmem:[%s10 + $0xc] sm:$0xf]
    %v465 = vunpack.c.l.b16 %v457
    %v466 = vunpack.c.l.b16 %v458
    %v467 = vunpack.c.l.b16 %v459
    %v468 = vunpack.c.l.b16 %v460
    %v469 = vpack.c.b16 %v466, %v465
    %v470 = vpack.c.b16 %v468, %v467
    %v474 = vsel %vm374, %v456, 0
    %476 = vmatprep.subr.bf16.mxu0 0
    %477 = vmatpush1.bf16.msra.mxu0 0
    %478 = vmatprep.subr.bf16.mxu0 0
    %479 = vmatpush1.bf16.msra.mxu0 0
    %480 = vmatprep.subr.bf16.mxu0 0
    %481 = vmatpush1.bf16.msra.mxu0 0
    %482 = vmatprep.subr.bf16.mxu0 0
    %483 = vmatpush1.bf16.msra.mxu0 0
    %484 = vmatprep.subr.bf16.mxu0 0
    %485 = vmatpush1.bf16.msra.mxu0 0
    %486 = vmatprep.subr.bf16.mxu0 0
    %487 = vmatpush1.bf16.msra.mxu0 0
    %488 = vmatprep.subr.bf16.mxu0 0
    %489 = vmatpush1.bf16.msra.mxu0 %v470
    %490 = vmatprep.subr.bf16.mxu0 0
    %491 = vmatpush1.bf16.msra.mxu0 %v469
    %492 = vmatprep.subr.bf16.mxu0 0
    %493 = vmatpush2.bf16.msra.mxu0 0
    %494 = vmatprep.subr.bf16.mxu0 0
    %495 = vmatpush2.bf16.msra.mxu0 0
    %496 = vmatprep.subr.bf16.mxu0 0
    %497 = vmatpush2.bf16.msra.mxu0 0
    %498 = vmatprep.subr.bf16.mxu0 0
    %499 = vmatpush2.bf16.msra.mxu0 0
    %500 = vmatprep.subr.bf16.mxu0 0
    %501 = vmatpush2.bf16.msra.mxu0 0
    %502 = vmatprep.subr.bf16.mxu0 0
    %503 = vmatpush2.bf16.msra.mxu0 0
    %504 = vmatprep.subr.bf16.mxu0 0
    %505 = vmatpush2.bf16.msra.mxu0 0
    %506 = vmatprep.subr.bf16.mxu0 0
    %507 = vmatpush2.bf16.msra.mxu0 0
    %508 = vmatprep.mubr.bf16.mxu0 0
    %509 = vmatmul.mubr.bf16.gmra.mxu0 %v474
    %v510 = vpop.f32.mrf.mxu0
    %v511 = vadd.f32 0.0, %v510
    %v512 = vpop.f32.mrf.mxu0
    %v513 = vpop.f32.mrf.mxu0
    %v514 = vpop.f32.mrf.mxu0
    %515 = vdwg.mxu0
    %v520 = vunpack.c.l.b16 %v452
    %v521 = vunpack.c.l.b16 %v453
    %v522 = vunpack.c.l.b16 %v454
    %v523 = vunpack.c.l.b16 %v455
    %v524 = vpack.c.b16 %v521, %v520
    %v525 = vpack.c.b16 %v523, %v522
    %v528 = vsel %vm374, %v408, 0
    %530 = vmatprep.subr.bf16.mxu0 0
    %531 = vmatpush1.bf16.msra.mxu0 0
    %532 = vmatprep.subr.bf16.mxu0 0
    %533 = vmatpush1.bf16.msra.mxu0 0
    %534 = vmatprep.subr.bf16.mxu0 0
    %535 = vmatpush1.bf16.msra.mxu0 0
    %536 = vmatprep.subr.bf16.mxu0 0
    %537 = vmatpush1.bf16.msra.mxu0 0
    %538 = vmatprep.subr.bf16.mxu0 0
    %539 = vmatpush1.bf16.msra.mxu0 0
    %540 = vmatprep.subr.bf16.mxu0 0
    %541 = vmatpush1.bf16.msra.mxu0 0
    %542 = vmatprep.subr.bf16.mxu0 0
    %543 = vmatpush1.bf16.msra.mxu0 %v525
    %544 = vmatprep.subr.bf16.mxu0 0
    %545 = vmatpush1.bf16.msra.mxu0 %v524
    %546 = vmatprep.subr.bf16.mxu0 0
    %547 = vmatpush2.bf16.msra.mxu0 0
    %548 = vmatprep.subr.bf16.mxu0 0
    %549 = vmatpush2.bf16.msra.mxu0 0
    %550 = vmatprep.subr.bf16.mxu0 0
    %551 = vmatpush2.bf16.msra.mxu0 0
    %552 = vmatprep.subr.bf16.mxu0 0
    %553 = vmatpush2.bf16.msra.mxu0 0
    %554 = vmatprep.subr.bf16.mxu0 0
    %555 = vmatpush2.bf16.msra.mxu0 0
    %556 = vmatprep.subr.bf16.mxu0 0
    %557 = vmatpush2.bf16.msra.mxu0 0
    %558 = vmatprep.subr.bf16.mxu0 0
    %559 = vmatpush2.bf16.msra.mxu0 0
    %560 = vmatprep.subr.bf16.mxu0 0
    %561 = vmatpush2.bf16.msra.mxu0 0
    %562 = vmatprep.mubr.bf16.mxu0 0
    %563 = vmatmul.mubr.bf16.gmra.mxu0 %v528
    %v564 = vpop.f32.mrf.mxu0
    %v565 = vadd.f32 %v511, %v564
    %v566 = vpop.f32.mrf.mxu0
    %v567 = vpop.f32.mrf.mxu0
    %v568 = vpop.f32.mrf.mxu0
    %569 = vdwg.mxu0
    %v570 = vld [vmem:[#allocation13] sm:$0x3]
    %v572 = vsel %vm229, %v570, 0
    %574 = vmatprep.subr.bf16.mxu0 0
    %575 = vmatpush1.bf16.msra.mxu0 0
    %576 = vmatprep.subr.bf16.mxu0 0
    %577 = vmatpush1.bf16.msra.mxu0 0
    %578 = vmatprep.subr.bf16.mxu0 0
    %579 = vmatpush1.bf16.msra.mxu0 0
    %580 = vmatprep.subr.bf16.mxu0 0
    %581 = vmatpush1.bf16.msra.mxu0 0
    %582 = vmatprep.subr.bf16.mxu0 0
    %583 = vmatpush1.bf16.msra.mxu0 0
    %584 = vmatprep.subr.bf16.mxu0 0
    %585 = vmatpush1.bf16.msra.mxu0 0
    %586 = vmatprep.subr.bf16.mxu0 0
    %587 = vmatpush1.bf16.msra.mxu0 0
    %588 = vmatprep.subr.bf16.mxu0 0
    %589 = vmatpush1.bf16.msra.mxu0 %v572
    %590 = vmatprep.subr.bf16.mxu0 0
    %591 = vmatpush2.bf16.msra.mxu0 0
    %592 = vmatprep.subr.bf16.mxu0 0
    %593 = vmatpush2.bf16.msra.mxu0 0
    %594 = vmatprep.subr.bf16.mxu0 0
    %595 = vmatpush2.bf16.msra.mxu0 0
    %596 = vmatprep.subr.bf16.mxu0 0
    %597 = vmatpush2.bf16.msra.mxu0 0
    %598 = vmatprep.subr.bf16.mxu0 0
    %599 = vmatpush2.bf16.msra.mxu0 0
    %600 = vmatprep.subr.bf16.mxu0 0
    %601 = vmatpush2.bf16.msra.mxu0 0
    %602 = vmatprep.subr.bf16.mxu0 0
    %603 = vmatpush2.bf16.msra.mxu0 0
    %604 = vmatprep.subr.bf16.mxu0 0
    %605 = vmatpush2.bf16.msra.mxu0 0
    %606 = vmatprep.mubr.bf16.mxu0 0
    %607 = vmatmul.mubr.bf16.gmra.mxu0 %v320
    %v608 = vpop.f32.mrf.mxu0
    %v609 = vadd.f32 0.0, %v608
    %v610 = vpop.f32.mrf.mxu0
    %v611 = vpop.f32.mrf.mxu0
    %v612 = vpop.f32.mrf.mxu0
    %613 = vdwg.mxu0
    %v614 = vadd.f32 %v565, %v609
    %v615 = vld [vmem:[#allocation14] sm:$0x1]
    %v617 = vlaneseq
    %v618 = vshrl.u32 %v617, 7
    %v619 = vsub.s32 0, %v618
    %v620 = vrot.slane %v615, %v619
    %v622 = vadd.f32 %v614, %v620
    %v623 = vsel %vm374, %v622, 0.0
    %624 = vadd.xlane.f32.xlu0 %v623
    %v625 = vpop.xlane.xlu0 %624
    %v626 = vmul.f32 %v625, %v378
    %v627 = vmul.f32 %v622, %v622
    %v628 = vsel %vm374, %v627, 0.0
    %629 = vadd.xlane.f32.xlu0 %v628
    %v630 = vpop.xlane.xlu0 %629
    %v631 = vmul.f32 %v630, %v378
    %v632 = vmul.f32 %v626, %v626
    %v633 = vsub.f32 %v631, %v632
    %v634 = vsub.f32 %v622, %v626
    %v635 = vadd.f32 %v633, 1e-05
    %v636 = vrsqrt.pop %v635
    %v637 = vmul.f32 %v634, %v636
    %v638 = vld [vmem:[#allocation16] sm:$0x1]
    %v640 = vlaneseq
    %v641 = vshrl.u32 %v640, 7
    %v642 = vsub.s32 0, %v641
    %v643 = vrot.slane %v638, %v642
    %v645 = vmul.f32 %v637, %v643
    %v646 = vld [vmem:[%s14] sm:$0x1]
    %v648 = vlaneseq
    %v649 = vshrl.u32 %v648, 7
    %v650 = vsub.s32 0, %v649
    %v651 = vrot.slane %v646, %v650
    %v653 = vadd.f32 %v645, %v651
    %v654 = vmax.f32 %v653, 0.0
    %v655 = vpack.c.bf16 %v654, %v654
    %v656 = vld [vmem:[%s15] sm:$0xf]
    %v657 = vld [vmem:[%s15 + $0x4] sm:$0xf]
    %v658 = vld [vmem:[%s15 + $0x8] sm:$0xf]
    %v659 = vld [vmem:[%s15 + $0xc] sm:$0xf]
    %v660 = vld [vmem:[%s16] sm:$0x1]
    %v662 = vlaneseq
    %v663 = vshrl.u32 %v662, 7
    %v664 = vsub.s32 0, %v663
    %v665 = vrot.slane %v660, %v664
    %v671 = vunpack.c.l.b16 %v656
    %v672 = vunpack.c.l.b16 %v657
    %v673 = vunpack.c.l.b16 %v658
    %v674 = vunpack.c.l.b16 %v659
    %v675 = vpack.c.b16 %v672, %v671
    %v676 = vpack.c.b16 %v674, %v673
    %v680 = vsel %vm374, %v655, 0
    %682 = vmatprep.subr.bf16.mxu0 0
    %683 = vmatpush1.bf16.msra.mxu0 0
    %684 = vmatprep.subr.bf16.mxu0 0
    %685 = vmatpush1.bf16.msra.mxu0 0
    %686 = vmatprep.subr.bf16.mxu0 0
    %687 = vmatpush1.bf16.msra.mxu0 0
    %688 = vmatprep.subr.bf16.mxu0 0
    %689 = vmatpush1.bf16.msra.mxu0 0
    %690 = vmatprep.subr.bf16.mxu0 0
    %691 = vmatpush1.bf16.msra.mxu0 0
    %692 = vmatprep.subr.bf16.mxu0 0
    %693 = vmatpush1.bf16.msra.mxu0 0
    %694 = vmatprep.subr.bf16.mxu0 0
    %695 = vmatpush1.bf16.msra.mxu0 %v676
    %696 = vmatprep.subr.bf16.mxu0 0
    %697 = vmatpush1.bf16.msra.mxu0 %v675
    %698 = vmatprep.subr.bf16.mxu0 0
    %699 = vmatpush2.bf16.msra.mxu0 0
    %700 = vmatprep.subr.bf16.mxu0 0
    %701 = vmatpush2.bf16.msra.mxu0 0
    %702 = vmatprep.subr.bf16.mxu0 0
    %703 = vmatpush2.bf16.msra.mxu0 0
    %704 = vmatprep.subr.bf16.mxu0 0
    %705 = vmatpush2.bf16.msra.mxu0 0
    %706 = vmatprep.subr.bf16.mxu0 0
    %707 = vmatpush2.bf16.msra.mxu0 0
    %708 = vmatprep.subr.bf16.mxu0 0
    %709 = vmatpush2.bf16.msra.mxu0 0
    %710 = vmatprep.subr.bf16.mxu0 0
    %711 = vmatpush2.bf16.msra.mxu0 0
    %712 = vmatprep.subr.bf16.mxu0 0
    %713 = vmatpush2.bf16.msra.mxu0 0
    %714 = vmatprep.mubr.bf16.mxu0 0
    %715 = vmatmul.mubr.bf16.gmra.mxu0 %v680
    %v716 = vpop.f32.mrf.mxu0
    %v717 = vadd.f32 %v665, %v716
    %v718 = vpop.f32.mrf.mxu0
    %v719 = vpop.f32.mrf.mxu0
    %v720 = vpop.f32.mrf.mxu0
    %721 = vdwg.mxu0
    %v722 = vmax.f32 %v717, 0.0
    %v723 = vld [vmem:[%s17] sm:$0x1]
    %v725 = vlaneseq
    %v726 = vshrl.u32 %v725, 7
    %v727 = vsub.s32 0, %v726
    %v728 = vrot.slane %v723, %v727
    %v730 = vmul.f32 %v722, %v728
    %v731 = vsel %vm374, %v730, 0.0
    %732 = vadd.xlane.f32.xlu0 %v731
    %v733 = vpop.xlane.xlu0 %732
    %v734 = vld [vmem:[#allocation2] sm:$0x1]
    %v736 = vlaneseq
    %v737 = vshrl.u32 %v736, 7
    %v738 = vsub.s32 0, %v737
    %v739 = vrot.slane %v734, %v738
    %v741 = vadd.f32 %v733, %v739
    %vm742 = vcmask 7168
    %743 = vst.msk [vmem:[%s19] sm:$0xff] %vm742, %v741
    // Predicated region
    $region114: #{tpu_custom_call.1} parent=1 // pred_check
      _
    $region115: #{tpu_custom_call.1} parent=1 // pred_check_branch
      %745 = sbr.rel (0) target = $region117
    $region116: #{tpu_custom_call.1} parent=1 // pred_region
      _
    $region117: #{tpu_custom_call.1} parent=1 // pred_fallthru
      _
    // Predicated region
    $region118: #{tpu_custom_call.1} parent=1 // pred_check
      _
    $region119: #{tpu_custom_call.1} parent=1 // pred_check_branch
      %747 = sbr.rel (0) target = $region121
    $region120: #{tpu_custom_call.1} parent=1 // pred_region
      _
    $region121: #{tpu_custom_call.1} parent=1 // pred_fallthru
      _
    %748 = vsyncpa [#allocation4], 1
    %749 = vsyncpa [#allocation6], 1
    %750 = vsyncpa [#allocation9], 1
    %751 = vsyncpa [#allocation12], 1
    %752 = vsyncpa [#allocation15], 1

</llo_original>
